<compile_context>
chip_gen: v7x
topology: tpu7x:2x2x1
jax: 0.10.0
libtpu: 0.0.40
codegen_flags: <defaults>
</compile_context>

<pallas_src>
import functools

import jax
import jax.numpy as jnp
from jax import lax
from jax.experimental import pallas as pl
from jax.experimental.pallas import tpu as pltpu


# ----------------------------------------------------------------------------
# helpers
# ----------------------------------------------------------------------------
def _vmem_capacity_bytes():
    """Physical VMEM per core, with a conservative fallback (v7x = 64 MiB)."""
    try:
        return int(pltpu.get_tpu_info().vmem_capacity_bytes)
    except Exception:
        return 64 << 20


def _round_up(x, m):
    return -(-x // m) * m


def _round_down_min(x, m):
    return max(m, (x // m) * m)


def _pick_tile_rows(rows, hw, target_block_bytes, min_grid_steps=4):
    """Row tile: biggest multiple of 8 under the block budget, but keep at
    least ~min_grid_steps grid steps so the pipeline overlaps and multi-TC
    chips (v7x) get >=2 blocks per core."""
    bytes_per_row_f32 = hw * 4
    cap = _round_down_min(target_block_bytes // bytes_per_row_f32, 8)
    depth_cap = _round_up(pl.cdiv(rows, min_grid_steps), 8)
    tile = min(cap, depth_cap)
    if tile >= rows:
        return rows  # single full-extent block (tiny inputs)
    return tile


def _vmem_limit(tile_rows, tile_cols, itemsize, vmem_cap):
    io_bytes = tile_rows * tile_cols * itemsize
    f32_bytes = tile_rows * tile_cols * 4
    # 2x double-buffered (in + out) blocks + ~3 block-sized f32 temps + slack
    need = 2 * 2 * io_bytes + 3 * f32_bytes + (2 << 20)
    cap = min(96 << 20, (vmem_cap * 3) // 4)
    return int(min(max(need, 16 << 20), cap))


# ----------------------------------------------------------------------------
# single-pass kernel: whole softmax axis resident in one block
# ----------------------------------------------------------------------------
def _softmax_rows_kernel(x_ref, o_ref, *, inv_lamb):
    x = x_ref[...].astype(jnp.float32) * inv_lamb
    m = jnp.max(x, axis=-1, keepdims=True)       # XLU row reduce
    e = jnp.exp(x - m)                           # EUP
    s = jnp.sum(e, axis=-1, keepdims=True)       # XLU row reduce
    o_ref[...] = (e / s).astype(o_ref.dtype)     # exact per-row normalize


def _g_softmax_single(x2d, inv_lamb, tile_rows, vmem_cap):
    rows, hw = x2d.shape
    grid_rows = pl.cdiv(rows, tile_rows)  # partial last block ok: per-row op
    kernel = functools.partial(_softmax_rows_kernel, inv_lamb=inv_lamb)
    return pl.pallas_call(
        kernel,
        out_shape=jax.ShapeDtypeStruct((rows, hw), x2d.dtype),
        grid_spec=pltpu.PrefetchScalarGridSpec(
            num_scalar_prefetch=0,
            grid=(grid_rows,),
            in_specs=[pl.BlockSpec((tile_rows, hw), lambda i: (i, 0))],
            out_specs=pl.BlockSpec((tile_rows, hw), lambda i: (i, 0)),
        ),
        compiler_params=pltpu.CompilerParams(
            dimension_semantics=("parallel",),
            vmem_limit_bytes=_vmem_limit(tile_rows, hw, x2d.dtype.itemsize,
                                         vmem_cap),
        ),
    )(x2d)


# ----------------------------------------------------------------------------
# two-pass (hw-tiled) path for large heatmaps: online stats, then normalize
# ----------------------------------------------------------------------------
def _softmax_stats_kernel(x_ref, m_ref, s_ref, *, inv_lamb, hw, tile_hw):
    j = pl.program_id(1)

    @pl.when(j == 0)
    def _():
        m_ref[...] = jnp.full_like(m_ref, -jnp.inf)
        s_ref[...] = jnp.zeros_like(s_ref)

    x = x_ref[...].astype(jnp.float32) * inv_lamb
    # mask lanes past the end of the row (partial last hw block) -> -inf
    lane = j * tile_hw + lax.broadcasted_iota(jnp.int32, x.shape, dimension=1)
    x = jnp.where(lane < hw, x, -jnp.inf)

    m_prev = m_ref[...]
    m_new = jnp.maximum(m_prev, jnp.max(x, axis=-1, keepdims=True))
    s_ref[...] = s_ref[...] * jnp.exp(m_prev - m_new) + jnp.sum(
        jnp.exp(x - m_new), axis=-1, keepdims=True)
    m_ref[...] = m_new


def _softmax_norm_kernel(x_ref, m_ref, s_ref, o_ref, *, inv_lamb):
    x = x_ref[...].astype(jnp.float32) * inv_lamb
    e = jnp.exp(x - m_ref[...])
    o_ref[...] = (e / s_ref[...]).astype(o_ref.dtype)


def _g_softmax_two_pass(x2d, inv_lamb, tile_rows, tile_hw, vmem_cap):
    rows, hw = x2d.shape
    grid = (pl.cdiv(rows, tile_rows), pl.cdiv(hw, tile_hw))
    vmem_limit = _vmem_limit(tile_rows, tile_hw, x2d.dtype.itemsize, vmem_cap)

    stats = functools.partial(_softmax_stats_kernel, inv_lamb=inv_lamb,
                              hw=hw, tile_hw=tile_hw)
    m, s = pl.pallas_call(
        stats,
        out_shape=(jax.ShapeDtypeStruct((rows, 1), jnp.float32),
                   jax.ShapeDtypeStruct((rows, 1), jnp.float32)),
        grid_spec=pltpu.PrefetchScalarGridSpec(
            num_scalar_prefetch=0,
            grid=grid,
            in_specs=[pl.BlockSpec((tile_rows, tile_hw), lambda i, j: (i, j))],
            out_specs=(pl.BlockSpec((tile_rows, 1), lambda i, j: (i, 0)),
                       pl.BlockSpec((tile_rows, 1), lambda i, j: (i, 0))),
        ),
        compiler_params=pltpu.CompilerParams(
            dimension_semantics=("parallel", "arbitrary"),
            vmem_limit_bytes=vmem_limit,
        ),
    )(x2d)

    norm = functools.partial(_softmax_norm_kernel, inv_lamb=inv_lamb)
    return pl.pallas_call(
        norm,
        out_shape=jax.ShapeDtypeStruct((rows, hw), x2d.dtype),
        grid_spec=pltpu.PrefetchScalarGridSpec(
            num_scalar_prefetch=0,
            grid=grid,
            in_specs=[pl.BlockSpec((tile_rows, tile_hw), lambda i, j: (i, j)),
                      pl.BlockSpec((tile_rows, 1), lambda i, j: (i, 0)),
                      pl.BlockSpec((tile_rows, 1), lambda i, j: (i, 0))],
            out_specs=pl.BlockSpec((tile_rows, tile_hw), lambda i, j: (i, j)),
        ),
        compiler_params=pltpu.CompilerParams(
            dimension_semantics=("parallel", "parallel"),
            vmem_limit_bytes=vmem_limit,
        ),
    )(x2d, m, s)


# ----------------------------------------------------------------------------
# public wrapper
# ----------------------------------------------------------------------------
def g_softmax(x, lamb: float = 0.2, tile_rows=None, hw_tile=None):
    """Spatial softmax with temperature `lamb` over the HxW dims of NCHW."""
    assert lamb > 0.0, "g_softmax temperature lamb must be positive"
    n, c, h, w = x.shape
    rows, hw = n * c, h * w
    x2d = x.reshape(rows, hw)
    inv_lamb = float(1.0 / lamb)

    vmem_cap = _vmem_capacity_bytes()
    # 128 MiB parts (v5e/v6e): ~6 MiB blocks; 64 MiB (v7x): ~4 MiB blocks.
    target_block_bytes = (6 << 20) if vmem_cap >= (100 << 20) else (4 << 20)

    # Large heatmaps: even a minimal 8-row f32 block can't double-buffer,
    # so chunk the softmax axis (two-pass online softmax).
    min_block_f32 = 8 * hw * 4
    use_hw_tiling = (hw_tile is not None) or (min_block_f32 > 2 * target_block_bytes)

    if use_hw_tiling:
        tr = min(rows, 8) if tile_rows is None else min(tile_rows, rows)
        if hw_tile is not None:
            th = min(hw_tile, hw)
        else:
            th = min(hw, _round_down_min(target_block_bytes // (tr * 4), 128))
        out2d = _g_softmax_two_pass(x2d, inv_lamb, tr, th, vmem_cap)
    else:
        if tile_rows is None:
            tr = _pick_tile_rows(rows, hw, target_block_bytes)
        else:
            tr = min(tile_rows, rows)
        out2d = _g_softmax_single(x2d, inv_lamb, tr, vmem_cap)

    return out2d.reshape(n, c, h, w)


def _g_softmax_ref(x, lamb: float = 0.2):
    n, c, h, w = x.shape
    x2d = x.reshape(n, c, h * w).astype(jnp.float32) / lamb
    y = jax.nn.softmax(x2d, axis=-1)
    return y.reshape(n, c, h, w).astype(x.dtype)


if __name__ == "__main__":
    key = jax.random.PRNGKey(0)

    # 1) Small NCHW heatmaps consistent with the module (single-pass path).
    N, C, H, W = 2, 4, 16, 16
    x = jax.random.normal(key, (N, C, H, W), dtype=jnp.float32)
    y = jax.block_until_ready(g_softmax(x, lamb=0.2))
    y_ref = _g_softmax_ref(x, lamb=0.2)
    assert y.shape == (N, C, H, W)
    sums = jnp.sum(y.reshape(N, C, -1).astype(jnp.float32), axis=-1)
    assert jnp.allclose(sums, 1.0, atol=1e-4), sums
    assert jnp.allclose(y, y_ref, atol=1e-4, rtol=1e-4)

    # 2) Multi-step grid with a non-divisible last row block
    #    (rows = 24, tile_rows = 16 -> grid = 2, masked partial writeback).
    x2 = jax.random.normal(jax.random.PRNGKey(1), (3, 8, 16, 16), dtype=jnp.float32)
    y2 = jax.block_until_ready(g_softmax(x2, lamb=0.2, tile_rows=16))
    y2_ref = _g_softmax_ref(x2, lamb=0.2)
    assert jnp.allclose(y2, y2_ref, atol=1e-4, rtol=1e-4)

    # 3) Auto-tiled row grid (min grid depth path): rows = 64, hw = 256.
    x3 = jax.random.normal(jax.random.PRNGKey(2), (4, 16, 16, 16), dtype=jnp.float32)
    y3 = jax.block_until_ready(g_softmax(x3, lamb=0.2))
    y3_ref = _g_softmax_ref(x3, lamb=0.2)
    assert jnp.allclose(y3, y3_ref, atol=1e-4, rtol=1e-4)

    # 4) Forced two-pass hw-tiled (online softmax) path with a non-divisible
    #    last hw block (hw = 1536, hw_tile = 640 -> 3 chunks, last partial).
    x4 = jax.random.normal(jax.random.PRNGKey(3), (1, 2, 32, 48), dtype=jnp.float32)
    y4 = jax.block_until_ready(g_softmax(x4, lamb=0.2, hw_tile=640))
    y4_ref = _g_softmax_ref(x4, lamb=0.2)
    assert jnp.allclose(y4, y4_ref, atol=1e-4, rtol=1e-4)
    sums4 = jnp.sum(y4.reshape(1, 2, -1).astype(jnp.float32), axis=-1)
    assert jnp.allclose(sums4, 1.0, atol=1e-4), sums4

    print("KERNEL_OK")
</pallas_src>

<mosaic_0001>
module attributes {stable_mosaic.version = 11 : i64} {
  func.func @_softmax_rows_kernel(%arg0: i32, %arg1: memref<8x256xf32, #tpu.memory_space<vmem>>, %arg2: memref<8x256xf32, #tpu.memory_space<vmem>>) attributes {dimension_semantics = [#tpu.dimension_semantics<parallel>], iteration_bounds = array<i64: 1>, scalar_prefetch = 0 : i64, scratch_operands = 0 : i64, tpu.core_type = #tpu.core_type<tc>, window_params = [{transform_indices = @transform_0, window_bounds = array<i64: 8, 256>}, {transform_indices = @transform_1, window_bounds = array<i64: 8, 256>}]} {
    %c0 = arith.constant 0 : index
    %c0_0 = arith.constant 0 : index
    %0 = vector.load %arg1[%c0, %c0_0] : memref<8x256xf32, #tpu.memory_space<vmem>>, vector<8x256xf32>
    %cst = arith.constant 5.000000e+00 : f32
    %1 = vector.broadcast %cst : f32 to vector<8x256xf32>
    %2 = arith.mulf %0, %1 : vector<8x256xf32>
    %cst_1 = arith.constant dense<0xFF800000> : vector<8xf32>
    %3 = vector.multi_reduction <maximumf>, %2, %cst_1 [1] : vector<8x256xf32> to vector<8xf32>
    %4 = vector.shape_cast %3 : vector<8xf32> to vector<8x1xf32>
    %5 = vector.broadcast %4 : vector<8x1xf32> to vector<8x256xf32>
    %6 = arith.subf %2, %5 : vector<8x256xf32>
    %7 = math.exp %6 : vector<8x256xf32>
    %cst_2 = arith.constant dense<0.000000e+00> : vector<8xf32>
    %8 = vector.multi_reduction <add>, %7, %cst_2 [1] : vector<8x256xf32> to vector<8xf32>
    %9 = vector.shape_cast %8 : vector<8xf32> to vector<8x1xf32>
    %10 = vector.broadcast %9 : vector<8x1xf32> to vector<8x256xf32>
    %11 = arith.divf %7, %10 : vector<8x256xf32>
    %c0_3 = arith.constant 0 : index
    %c0_4 = arith.constant 0 : index
    %12 = vector.load %arg2[%c0_3, %c0_4] : memref<8x256xf32, #tpu.memory_space<vmem>>, vector<8x256xf32>
    tpu.vector_store %arg2[%c0_3, %c0_4], %11 {strides = array<i32>} : memref<8x256xf32, #tpu.memory_space<vmem>>, vector<8x256xf32>,
    return
  }
  func.func @transform_0(%arg0: i32) -> (i32, i32) {
    %c0_i32 = arith.constant 0 : i32
    %c0_i32_0 = arith.constant 0 : i32
    return %arg0, %c0_i32 : i32, i32
  }
  func.func @transform_1(%arg0: i32) -> (i32, i32) {
    %c0_i32 = arith.constant 0 : i32
    %c0_i32_0 = arith.constant 0 : i32
    return %arg0, %c0_i32 : i32, i32
  }
}

</mosaic_0001>

<llo_original>
// kernel: tpu_custom_call.1
$region0: #{tpu_custom_call.1}
  #allocation0 [shape = 'u32[]', space=smem, size = 0x4, offset = 0x4, fixed_abs, tag = 'smem constant byte address 0x4 - core index']
  #allocation1 [shape = 'u32[144,128]{1,0:T(1,128)}', space=vmem, size = 0x12000, scoped, tag = 'internal scratch']
  %s0 = inlined_call_operand.hbm [shape: f32[8,256], index: 0, kind: input, shape index: {}]
  %s1 = inlined_call_operand.hbm [shape: f32[8,256], index: 1, kind: output, shape index: {}]
  %s2 = sld [smem:[#allocation0]]
  $region18: #{tpu_custom_call.1} parent=0
    _
  %s4 = ssub.s32 1, %s2
  %s5 = scalar_select 0, %s4, %s2
  $region1: #{tpu_custom_call.1} parent=0
    #allocation2 [shape = 'u8[8192]{0}', space=vmem, size = 0x2000, scoped, tag = 'input window, operand 0, single buffered']
    #allocation3 [shape = 's32[1]{0}', space=sflag, size = 0x4, scoped, tag = 'scoped memory for tpu_custom_call.1']
    #allocation4 [shape = 's32[1]{0}', space=sflag, size = 0x4, scoped, tag = 'scoped memory for tpu_custom_call.1']
    #allocation5 [shape = 'u8[8192]{0}', space=vmem, size = 0x2000, scoped, tag = 'output window, operand 0, single buffered']
    %6 = vsyncpa [#allocation3], 0
    %7 = vsyncpa [#allocation4], 0
    // Predicated region
    $region2: #{tpu_custom_call.1} parent=1 // pred_check
      _
    $region3: #{tpu_custom_call.1} parent=1 // pred_check_branch
      %9 = sbr.rel (0) target = $region5
    $region4: #{tpu_custom_call.1} parent=1 // pred_region
      %s11 = ssub.s32 256, 256
      %12 = vsyncadd [#allocation3], %s11
      %s14 = sshll.u32 [#allocation2], 4
      %s15 = int_to_ptr.vmem [resolvable:$true] %s14
      %17 = dma.hbm_to_vmem [thread:$0]  %s0, 256, %s15, [#allocation3]
    $region5: #{tpu_custom_call.1} parent=1 // pred_fallthru
      _
    // Predicated region
    $region6: #{tpu_custom_call.1} parent=1 // pred_check
      _
    $region7: #{tpu_custom_call.1} parent=1 // pred_check_branch
      %19 = sbr.rel (0) target = $region9
    $region8: #{tpu_custom_call.1} parent=1 // pred_region
      %20 = dma.done [#allocation3], 256
    $region9: #{tpu_custom_call.1} parent=1 // pred_fallthru
      _
    %v21 = vld [vmem:[#allocation2] sm:$0xff]
    %v22 = vld [vmem:[#allocation2 + $0x8] sm:$0xff]
    %v23 = vmul.f32 %v21, 5.0
    %v24 = vmul.f32 %v22, 5.0
    %v25 = vmax.f32 %v23, %v24
    %26 = vmax.xlane.f32.xlu0 %v25
    %v27 = vpop.xlane.xlu0 %26
    %v28 = vsub.f32 %v23, %v27
    %v29 = vsub.f32 %v24, %v27
    %v30 = vmul.f32 %v28, 1.442695
    %v31 = vpow.pop %v30
    %v32 = vmul.f32 %v29, 1.442695
    %v33 = vpow.pop %v32
    %v34 = vadd.f32 %v31, %v33
    %35 = vadd.xlane.f32.xlu0 %v34
    %v36 = vpop.xlane.xlu0 %35
    %v37 = vrcp.pop %v36
    %v38 = vmul.f32 %v31, %v37
    %v39 = vmul.f32 %v33, %v37
    %40 = vst [vmem:[#allocation5] sm:$0xff] %v38
    %41 = vst [vmem:[#allocation5 + $0x8] sm:$0xff] %v39
    // Predicated region
    $region10: #{tpu_custom_call.1} parent=1 // pred_check
      _
    $region11: #{tpu_custom_call.1} parent=1 // pred_check_branch
      %43 = sbr.rel (0) target = $region13
    $region12: #{tpu_custom_call.1} parent=1 // pred_region
      %s45 = ssub.s32 256, 256
      %46 = vsyncadd [#allocation4], %s45
      %s48 = sshll.u32 [#allocation5], 4
      %s49 = int_to_ptr.vmem [resolvable:$true] %s48
      %51 = dma.vmem_to_hbm [thread:$0]  %s49, 256, %s1, [#allocation4]
    $region13: #{tpu_custom_call.1} parent=1 // pred_fallthru
      _
    // Predicated region
    $region14: #{tpu_custom_call.1} parent=1 // pred_check
      _
    $region15: #{tpu_custom_call.1} parent=1 // pred_check_branch
      %53 = sbr.rel (0) target = $region17
    $region16: #{tpu_custom_call.1} parent=1 // pred_region
      %54 = dma.done [#allocation4], 256
    $region17: #{tpu_custom_call.1} parent=1 // pred_fallthru
      _
    %55 = vsyncpa [#allocation3], 1
    %56 = vsyncpa [#allocation4], 1

</llo_original>
